<compile_context>
chip_gen: v6e
topology: v6e:2x2x1
jax: 0.10.0
libtpu: 0.0.40
codegen_flags: <defaults>
</compile_context>

<pallas_src>
import jax
import jax.numpy as jnp
from jax.experimental import pallas as pl
from jax.experimental.pallas import tpu as pltpu

HIDDEN = 128
NUM_HEADS = 2          # ('left', 'right') fused into one head matmul
HEADS_PAD = 8          # fused heads padded to one sublane tile (8 rows)
_VPU_K_THRESHOLD = 8   # contractions this small skip the MXU


def _round_up(x, m):
    return ((x + m - 1) // m) * m


def _policy_kernel(x_ref, w1t_ref, w2t_ref, wht_ref, bias_ref, out_ref):
    # Feature-major layout: batch is on lanes.
    x = x_ref[...]                                  # (input_dim, TB) f32
    k_dim = x.shape[0]

    b1 = bias_ref[:, 0:1]                           # (HIDDEN, 1) f32
    b2 = bias_ref[:, 1:2]                           # (HIDDEN, 1) f32
    bh = bias_ref[0:HEADS_PAD, 2:3]                 # (HEADS_PAD, 1) f32

    # ---- Layer 1: Linear(input_dim, 128) + ReLU --------------------------
    if k_dim <= _VPU_K_THRESHOLD:
        # Tiny contraction (K = input_dim = 2): rank-K broadcast update on the
        # VPU; a K=2 MXU matmul would be <2% utilized.
        w1t = w1t_ref[...]                          # (HIDDEN, input_dim) f32
        acc = w1t[:, 0:1] * x[0:1, :]
        for k in range(1, k_dim):                   # static unroll (k_dim tiny)
            acc = acc + w1t[:, k:k + 1] * x[k:k + 1, :]
    else:
        acc = jnp.dot(w1t_ref[...].astype(jnp.bfloat16), x.astype(jnp.bfloat16),
                      preferred_element_type=jnp.float32)
    h1 = jnp.maximum(acc + b1, 0.0)                 # (HIDDEN, TB) f32

    # ---- Layer 2: Linear(128, 128) + ReLU (MXU, bf16 operands, f32 acc) --
    h2 = jnp.dot(w2t_ref[...], h1.astype(jnp.bfloat16),
                 preferred_element_type=jnp.float32) + b2
    h2 = jnp.maximum(h2, 0.0)                       # (HIDDEN, TB) f32

    # ---- Fused heads: (8,128)@(128,TB) -> one lane-dense (8,TB) block ----
    y = jnp.dot(wht_ref[...], h2.astype(jnp.bfloat16),
                preferred_element_type=jnp.float32) + bh
    out_ref[...] = jnp.clip(y, 0.0, 1.0)            # rows 0/1 = left/right


def prepare_params(params):
    """One-time layout prep (call once, outside the RL step loop):
    transpose to feature-major, fuse + pad the two heads to 8 sublanes,
    cast MXU weights to bf16, pack the three biases into one operand."""
    w1t = params["w1"].T.astype(jnp.float32)                   # (HIDDEN, input_dim)
    w2t = params["w2"].T.astype(jnp.bfloat16)                  # (HIDDEN, HIDDEN)
    wht = jnp.zeros((HEADS_PAD, HIDDEN), jnp.bfloat16)
    wht = wht.at[:NUM_HEADS, :].set(params["wh"].T.astype(jnp.bfloat16))
    bias = jnp.zeros((HIDDEN, 3), jnp.float32)
    bias = bias.at[:, 0].set(params["b1"].reshape(-1))
    bias = bias.at[:, 1].set(params["b2"].reshape(-1))
    bias = bias.at[:NUM_HEADS, 2].set(params["bh"].reshape(-1))
    return {"w1t": w1t, "w2t": w2t, "wht": wht, "bias": bias}


def policy_forward(state, prepared, *, tile_b=4096):
    """state: (B, input_dim) f32.  Returns dict {'left': (B,1), 'right': (B,1)}."""
    B, input_dim = state.shape

    # Batch tile (lane dim): multiple of 128, large enough to amortize the
    # per-grid-step overhead, capped at ~half the padded batch so the grid has
    # >= 2 "parallel" steps whenever possible (both v7x TensorCores busy).
    b128 = _round_up(max(B, 1), 128)
    tb = min(_round_up(tile_b, 128), _round_up(pl.cdiv(b128, 2), 128))
    tb = max(tb, 128)
    b_pad = _round_up(B, tb)

    # Feature-major input: batch on lanes.  Zero-padded columns are inert.
    state_t = jnp.pad(state.T, ((0, 0), (0, b_pad - B)))

    def const(shape):
        return pl.BlockSpec(shape, lambda i: (0, 0))   # VMEM-resident weights

    out = pl.pallas_call(
        _policy_kernel,
        out_shape=jax.ShapeDtypeStruct((HEADS_PAD, b_pad), jnp.float32),
        grid=(b_pad // tb,),
        in_specs=[
            pl.BlockSpec((input_dim, tb), lambda i: (0, i)),   # state (tiled)
            const((HIDDEN, input_dim)),                        # w1^T  (f32)
            const((HIDDEN, HIDDEN)),                           # w2^T  (bf16)
            const((HEADS_PAD, HIDDEN)),                        # fused heads (bf16)
            const((HIDDEN, 3)),                                # packed biases (f32)
        ],
        out_specs=pl.BlockSpec((HEADS_PAD, tb), lambda i: (0, i)),
        compiler_params=pltpu.CompilerParams(
            dimension_semantics=("parallel",)),                # megacore on v7x
    )(state_t, prepared["w1t"], prepared["w2t"], prepared["wht"],
      prepared["bias"])

    # Row 0 = 'left', row 1 = 'right'; drop batch padding, reshape to (B, 1).
    return {"left": out[0, :B].reshape(B, 1), "right": out[1, :B].reshape(B, 1)}


def init_params(key, input_dim):
    """Deterministic init mimicking PyTorch Linear default (uniform +-1/sqrt(fan_in))."""
    ks = jax.random.split(key, 6)

    def lin(kw, kb, fan_in, fan_out):
        bound = 1.0 / jnp.sqrt(jnp.float32(fan_in))
        w = jax.random.uniform(kw, (fan_in, fan_out), jnp.float32, -bound, bound)
        b = jax.random.uniform(kb, (1, fan_out), jnp.float32, -bound, bound)
        return w, b

    w1, b1 = lin(ks[0], ks[1], input_dim, HIDDEN)
    w2, b2 = lin(ks[2], ks[3], HIDDEN, HIDDEN)
    # Fused head: column 0 = 'left' Linear(128,1), column 1 = 'right'.
    wh, bh = lin(ks[4], ks[5], HIDDEN, NUM_HEADS)
    return {"w1": w1, "b1": b1, "w2": w2, "b2": b2, "wh": wh, "bh": bh}


def policy_forward_ref(state, p):
    """Pure f32 reference matching the PyTorch module."""
    h1 = jnp.maximum(state @ p["w1"] + p["b1"], 0.0)
    h2 = jnp.maximum(h1 @ p["w2"] + p["b2"], 0.0)
    y = jnp.clip(h2 @ p["wh"] + p["bh"], 0.0, 1.0)
    return {"left": y[:, 0:1], "right": y[:, 1:2]}


if __name__ == "__main__":
    key = jax.random.PRNGKey(0)
    k_param, k_state1, k_state2 = jax.random.split(key, 3)

    input_dim = 2   # MountainCar observation: (position, velocity)
    params = init_params(k_param, input_dim)
    prepared = prepare_params(params)      # one-time layout prep (hoisted)

    # bf16 MXU operands => compare against the f32 reference with loose tol.
    ATOL = 1e-2
    RTOL = 1e-2

    # Case 1: tiny RL batch (single grid step).
    state_small = jax.random.normal(k_state1, (8, input_dim), jnp.float32)
    out_small = policy_forward(state_small, prepared)
    jax.block_until_ready(out_small)
    ref_small = policy_forward_ref(state_small, params)
    for k in ("left", "right"):
        assert out_small[k].shape == (8, 1)
        assert jnp.allclose(out_small[k], ref_small[k], atol=ATOL, rtol=RTOL)

    # Case 2: non-multiple batch; default tiling -> 2-step "parallel" grid.
    state_big = jax.random.normal(k_state2, (300, input_dim), jnp.float32)
    out_big = policy_forward(state_big, prepared)
    jax.block_until_ready(out_big)
    ref_big = policy_forward_ref(state_big, params)
    for k in ("left", "right"):
        assert out_big[k].shape == (300, 1)
        assert jnp.allclose(out_big[k], ref_big[k], atol=ATOL, rtol=RTOL)

    # Case 3: small explicit tile -> 3-step grid + batch-padding path.
    out_big2 = policy_forward(state_big, prepared, tile_b=128)
    jax.block_until_ready(out_big2)
    for k in ("left", "right"):
        assert jnp.allclose(out_big2[k], ref_big[k], atol=ATOL, rtol=RTOL)

    print("KERNEL_OK")
</pallas_src>

<mosaic_0001>
module attributes {stable_mosaic.version = 11 : i64} {
  func.func @_policy_kernel(%arg0: i32, %arg1: memref<2x128xf32, #tpu.memory_space<vmem>>, %arg2: memref<128x2xf32, #tpu.memory_space<vmem>>, %arg3: memref<128x128xbf16, #tpu.memory_space<vmem>>, %arg4: memref<8x128xbf16, #tpu.memory_space<vmem>>, %arg5: memref<128x3xf32, #tpu.memory_space<vmem>>, %arg6: memref<8x128xf32, #tpu.memory_space<vmem>>) attributes {dimension_semantics = [#tpu.dimension_semantics<parallel>], iteration_bounds = array<i64: 1>, scalar_prefetch = 0 : i64, scratch_operands = 0 : i64, tpu.core_type = #tpu.core_type<tc>, window_params = [{transform_indices = @transform_0, window_bounds = array<i64: 2, 128>}, {pipeline_mode = #tpu.pipeline_mode<synchronous>, transform_indices = @transform_1, window_bounds = array<i64: 128, 2>}, {pipeline_mode = #tpu.pipeline_mode<synchronous>, transform_indices = @transform_2, window_bounds = array<i64: 128, 128>}, {pipeline_mode = #tpu.pipeline_mode<synchronous>, transform_indices = @transform_3, window_bounds = array<i64: 8, 128>}, {pipeline_mode = #tpu.pipeline_mode<synchronous>, transform_indices = @transform_4, window_bounds = array<i64: 128, 3>}, {transform_indices = @transform_5, window_bounds = array<i64: 8, 128>}]} {
    %c0 = arith.constant 0 : index
    %c0_0 = arith.constant 0 : index
    %0 = vector.load %arg1[%c0, %c0_0] : memref<2x128xf32, #tpu.memory_space<vmem>>, vector<2x128xf32>
    %c0_1 = arith.constant 0 : index
    %c0_2 = arith.constant 0 : index
    %1 = vector.load %arg5[%c0_1, %c0_2] : memref<128x3xf32, #tpu.memory_space<vmem>>, vector<128x1xf32>
    %c0_3 = arith.constant 0 : index
    %c1 = arith.constant 1 : index
    %2 = vector.load %arg5[%c0_3, %c1] : memref<128x3xf32, #tpu.memory_space<vmem>>, vector<128x1xf32>
    %c0_4 = arith.constant 0 : index
    %c2 = arith.constant 2 : index
    %3 = vector.load %arg5[%c0_4, %c2] : memref<128x3xf32, #tpu.memory_space<vmem>>, vector<8x1xf32>
    %c0_5 = arith.constant 0 : index
    %c0_6 = arith.constant 0 : index
    %4 = vector.load %arg2[%c0_5, %c0_6] : memref<128x2xf32, #tpu.memory_space<vmem>>, vector<128x2xf32>
    %5 = vector.extract_strided_slice %4 {offsets = [0, 0], sizes = [128, 1], strides = [1, 1]} : vector<128x2xf32> to vector<128x1xf32>
    %6 = vector.extract_strided_slice %0 {offsets = [0, 0], sizes = [1, 128], strides = [1, 1]} : vector<2x128xf32> to vector<1x128xf32>
    %7 = vector.broadcast %5 : vector<128x1xf32> to vector<128x128xf32>
    %8 = vector.broadcast %6 : vector<1x128xf32> to vector<128x128xf32>
    %9 = arith.mulf %7, %8 : vector<128x128xf32>
    %10 = vector.extract_strided_slice %4 {offsets = [0, 1], sizes = [128, 1], strides = [1, 1]} : vector<128x2xf32> to vector<128x1xf32>
    %11 = vector.extract_strided_slice %0 {offsets = [1, 0], sizes = [1, 128], strides = [1, 1]} : vector<2x128xf32> to vector<1x128xf32>
    %12 = vector.broadcast %10 : vector<128x1xf32> to vector<128x128xf32>
    %13 = vector.broadcast %11 : vector<1x128xf32> to vector<128x128xf32>
    %14 = arith.mulf %12, %13 : vector<128x128xf32>
    %15 = arith.addf %9, %14 : vector<128x128xf32>
    %16 = vector.broadcast %1 : vector<128x1xf32> to vector<128x128xf32>
    %17 = arith.addf %15, %16 : vector<128x128xf32>
    %cst = arith.constant 0.000000e+00 : f32
    %18 = vector.broadcast %cst : f32 to vector<128x128xf32>
    %19 = arith.maximumf %17, %18 : vector<128x128xf32>
    %c0_7 = arith.constant 0 : index
    %c0_8 = arith.constant 0 : index
    %20 = vector.load %arg3[%c0_7, %c0_8] : memref<128x128xbf16, #tpu.memory_space<vmem>>, vector<128x128xbf16>
    %21 = arith.truncf %19 : vector<128x128xf32> to vector<128x128xbf16>
    %cst_9 = arith.constant dense<0.000000e+00> : vector<128x128xf32>
    %22 = tpu.matmul %20, %21, %cst_9 {dimension_numbers = #tpu.dot_dimension_numbers<[1], [0], [0], [1], [0, 0, 1, 1], [], []>} : vector<128x128xbf16>, vector<128x128xbf16>, vector<128x128xf32> -> vector<128x128xf32>
    %23 = vector.broadcast %2 : vector<128x1xf32> to vector<128x128xf32>
    %24 = arith.addf %22, %23 : vector<128x128xf32>
    %cst_10 = arith.constant 0.000000e+00 : f32
    %25 = vector.broadcast %cst_10 : f32 to vector<128x128xf32>
    %26 = arith.maximumf %24, %25 : vector<128x128xf32>
    %c0_11 = arith.constant 0 : index
    %c0_12 = arith.constant 0 : index
    %27 = vector.load %arg4[%c0_11, %c0_12] : memref<8x128xbf16, #tpu.memory_space<vmem>>, vector<8x128xbf16>
    %28 = arith.truncf %26 : vector<128x128xf32> to vector<128x128xbf16>
    %cst_13 = arith.constant dense<0.000000e+00> : vector<8x128xf32>
    %29 = tpu.matmul %27, %28, %cst_13 {dimension_numbers = #tpu.dot_dimension_numbers<[1], [0], [0], [1], [0, 0, 1, 1], [], []>} : vector<8x128xbf16>, vector<128x128xbf16>, vector<8x128xf32> -> vector<8x128xf32>
    %30 = vector.broadcast %3 : vector<8x1xf32> to vector<8x128xf32>
    %31 = arith.addf %29, %30 : vector<8x128xf32>
    %cst_14 = arith.constant 0.000000e+00 : f32
    %cst_15 = arith.constant 1.000000e+00 : f32
    %32 = vector.broadcast %cst_14 : f32 to vector<8x128xf32>
    %33 = arith.maximumf %32, %31 : vector<8x128xf32>
    %34 = vector.broadcast %cst_15 : f32 to vector<8x128xf32>
    %35 = arith.minimumf %34, %33 : vector<8x128xf32>
    %c0_16 = arith.constant 0 : index
    %c0_17 = arith.constant 0 : index
    %36 = vector.load %arg6[%c0_16, %c0_17] : memref<8x128xf32, #tpu.memory_space<vmem>>, vector<8x128xf32>
    tpu.vector_store %arg6[%c0_16, %c0_17], %35 {strides = array<i32>} : memref<8x128xf32, #tpu.memory_space<vmem>>, vector<8x128xf32>,
    return
  }
  func.func @transform_0(%arg0: i32) -> (i32, i32) {
    %c0_i32 = arith.constant 0 : i32
    %c0_i32_0 = arith.constant 0 : i32
    return %c0_i32, %arg0 : i32, i32
  }
  func.func @transform_1(%arg0: i32) -> (i32, i32) {
    %c0_i32 = arith.constant 0 : i32
    %c0_i32_0 = arith.constant 0 : i32
    %c0_i32_1 = arith.constant 0 : i32
    return %c0_i32, %c0_i32_0 : i32, i32
  }
  func.func @transform_2(%arg0: i32) -> (i32, i32) {
    %c0_i32 = arith.constant 0 : i32
    %c0_i32_0 = arith.constant 0 : i32
    %c0_i32_1 = arith.constant 0 : i32
    return %c0_i32, %c0_i32_0 : i32, i32
  }
  func.func @transform_3(%arg0: i32) -> (i32, i32) {
    %c0_i32 = arith.constant 0 : i32
    %c0_i32_0 = arith.constant 0 : i32
    %c0_i32_1 = arith.constant 0 : i32
    return %c0_i32, %c0_i32_0 : i32, i32
  }
  func.func @transform_4(%arg0: i32) -> (i32, i32) {
    %c0_i32 = arith.constant 0 : i32
    %c0_i32_0 = arith.constant 0 : i32
    %c0_i32_1 = arith.constant 0 : i32
    return %c0_i32, %c0_i32_0 : i32, i32
  }
  func.func @transform_5(%arg0: i32) -> (i32, i32) {
    %c0_i32 = arith.constant 0 : i32
    %c0_i32_0 = arith.constant 0 : i32
    return %c0_i32, %arg0 : i32, i32
  }
}

</mosaic_0001>

<llo_original>
// kernel: tpu_custom_call.1
$region0: #{tpu_custom_call.1}
  #allocation0 [shape = 'u32[]', space=smem, size = 0x4, offset = 0x4, fixed_abs, tag = 'smem constant byte address 0x4 - core index']
  #allocation1 [shape = 'u32[144,128]{1,0:T(1,128)}', space=vmem, size = 0x12000, scoped, tag = 'internal scratch']
  %s0 = inlined_call_operand.vmem [shape: f32[2,128], index: 0, kind: input, shape index: {}]
  %s1 = inlined_call_operand.vmem [shape: f32[128,2], index: 1, kind: input, shape index: {}]
  %s2 = inlined_call_operand.vmem [shape: bf16[128,128], index: 2, kind: input, shape index: {}]
  %s3 = inlined_call_operand.vmem [shape: bf16[8,128], index: 3, kind: input, shape index: {}]
  %s4 = inlined_call_operand.vmem [shape: f32[128,3], index: 4, kind: input, shape index: {}]
  %s5 = inlined_call_operand.hbm [shape: f32[8,128], index: 5, kind: output, shape index: {}]
  %s6 = sld [smem:[#allocation0]]
  $region30: #{tpu_custom_call.1} parent=0
    _
  %s8 = ssub.s32 1, %s6
  %s9 = scalar_select 0, %s8, %s6
  $region1: #{tpu_custom_call.1} parent=0
    #allocation2 [shape = 'u8[4096]{0}', space=vmem, size = 0x1000, scoped, tag = 'output window, operand 0, single buffered']
    #allocation3 [shape = 's32[1]{0}', space=sflag, size = 0x4, scoped, tag = 'scoped memory for tpu_custom_call.1']
    %10 = vsyncpa [#allocation3], 0
    // Predicated region
    $region2: #{tpu_custom_call.1} parent=1 // pred_check
      _
    $region3: #{tpu_custom_call.1} parent=1 // pred_check_branch
      %12 = sbr.rel (0) target = $region5
    $region4: #{tpu_custom_call.1} parent=1 // pred_region
      _
    $region5: #{tpu_custom_call.1} parent=1 // pred_fallthru
      _
    // Predicated region
    $region6: #{tpu_custom_call.1} parent=1 // pred_check
      _
    $region7: #{tpu_custom_call.1} parent=1 // pred_check_branch
      %14 = sbr.rel (0) target = $region9
    $region8: #{tpu_custom_call.1} parent=1 // pred_region
      _
    $region9: #{tpu_custom_call.1} parent=1 // pred_fallthru
      _
    // Predicated region
    $region10: #{tpu_custom_call.1} parent=1 // pred_check
      _
    $region11: #{tpu_custom_call.1} parent=1 // pred_check_branch
      %16 = sbr.rel (0) target = $region13
    $region12: #{tpu_custom_call.1} parent=1 // pred_region
      _
    $region13: #{tpu_custom_call.1} parent=1 // pred_fallthru
      _
    // Predicated region
    $region14: #{tpu_custom_call.1} parent=1 // pred_check
      _
    $region15: #{tpu_custom_call.1} parent=1 // pred_check_branch
      %18 = sbr.rel (0) target = $region17
    $region16: #{tpu_custom_call.1} parent=1 // pred_region
      _
    $region17: #{tpu_custom_call.1} parent=1 // pred_fallthru
      _
    // Predicated region
    $region18: #{tpu_custom_call.1} parent=1 // pred_check
      _
    $region19: #{tpu_custom_call.1} parent=1 // pred_check_branch
      %20 = sbr.rel (0) target = $region21
    $region20: #{tpu_custom_call.1} parent=1 // pred_region
      _
    $region21: #{tpu_custom_call.1} parent=1 // pred_fallthru
      _
    %v22 = vld [vmem:[%s0] sm:$0x3]
    %v23 = vld [vmem:[%s4] sm:$0xff]
    %v24 = vld [vmem:[%s4 + $0x8] sm:$0xff]
    %v25 = vld [vmem:[%s4 + $0x10] sm:$0xff]
    %v26 = vld [vmem:[%s4 + $0x18] sm:$0xff]
    %v27 = vld [vmem:[%s4 + $0x20] sm:$0xff]
    %v28 = vld [vmem:[%s4 + $0x28] sm:$0xff]
    %v29 = vld [vmem:[%s4 + $0x30] sm:$0xff]
    %v30 = vld [vmem:[%s4 + $0x38] sm:$0xff]
    %v31 = vld [vmem:[%s4 + $0x40] sm:$0xff]
    %v32 = vld [vmem:[%s4 + $0x48] sm:$0xff]
    %v33 = vld [vmem:[%s4 + $0x50] sm:$0xff]
    %v34 = vld [vmem:[%s4 + $0x58] sm:$0xff]
    %v35 = vld [vmem:[%s4 + $0x60] sm:$0xff]
    %v36 = vld [vmem:[%s4 + $0x68] sm:$0xff]
    %v37 = vld [vmem:[%s4 + $0x70] sm:$0xff]
    %v38 = vld [vmem:[%s4 + $0x78] sm:$0xff]
    %v39 = vld [vmem:[%s1] sm:$0xff]
    %v40 = vld [vmem:[%s1 + $0x8] sm:$0xff]
    %v41 = vld [vmem:[%s1 + $0x10] sm:$0xff]
    %v42 = vld [vmem:[%s1 + $0x18] sm:$0xff]
    %v43 = vld [vmem:[%s1 + $0x20] sm:$0xff]
    %v44 = vld [vmem:[%s1 + $0x28] sm:$0xff]
    %v45 = vld [vmem:[%s1 + $0x30] sm:$0xff]
    %v46 = vld [vmem:[%s1 + $0x38] sm:$0xff]
    %v47 = vld [vmem:[%s1 + $0x40] sm:$0xff]
    %v48 = vld [vmem:[%s1 + $0x48] sm:$0xff]
    %v49 = vld [vmem:[%s1 + $0x50] sm:$0xff]
    %v50 = vld [vmem:[%s1 + $0x58] sm:$0xff]
    %v51 = vld [vmem:[%s1 + $0x60] sm:$0xff]
    %v52 = vld [vmem:[%s1 + $0x68] sm:$0xff]
    %v53 = vld [vmem:[%s1 + $0x70] sm:$0xff]
    %v54 = vld [vmem:[%s1 + $0x78] sm:$0xff]
    %56 = vset.pattern.permute.xlu0 0
    %57 = vperm.xlu0 %56, %v39
    %v58 = vpop.permute.xlu0 %57
    %61 = vset.pattern.permute.xlu0 0
    %62 = vperm.xlu0 %61, %v40
    %v63 = vpop.permute.xlu0 %62
    %66 = vset.pattern.permute.xlu0 0
    %67 = vperm.xlu0 %66, %v41
    %v68 = vpop.permute.xlu0 %67
    %71 = vset.pattern.permute.xlu0 0
    %72 = vperm.xlu0 %71, %v42
    %v73 = vpop.permute.xlu0 %72
    %76 = vset.pattern.permute.xlu0 0
    %77 = vperm.xlu0 %76, %v43
    %v78 = vpop.permute.xlu0 %77
    %81 = vset.pattern.permute.xlu0 0
    %82 = vperm.xlu0 %81, %v44
    %v83 = vpop.permute.xlu0 %82
    %86 = vset.pattern.permute.xlu0 0
    %87 = vperm.xlu0 %86, %v45
    %v88 = vpop.permute.xlu0 %87
    %91 = vset.pattern.permute.xlu0 0
    %92 = vperm.xlu0 %91, %v46
    %v93 = vpop.permute.xlu0 %92
    %96 = vset.pattern.permute.xlu0 0
    %97 = vperm.xlu0 %96, %v47
    %v98 = vpop.permute.xlu0 %97
    %101 = vset.pattern.permute.xlu0 0
    %102 = vperm.xlu0 %101, %v48
    %v103 = vpop.permute.xlu0 %102
    %106 = vset.pattern.permute.xlu0 0
    %107 = vperm.xlu0 %106, %v49
    %v108 = vpop.permute.xlu0 %107
    %111 = vset.pattern.permute.xlu0 0
    %112 = vperm.xlu0 %111, %v50
    %v113 = vpop.permute.xlu0 %112
    %116 = vset.pattern.permute.xlu0 0
    %117 = vperm.xlu0 %116, %v51
    %v118 = vpop.permute.xlu0 %117
    %121 = vset.pattern.permute.xlu0 0
    %122 = vperm.xlu0 %121, %v52
    %v123 = vpop.permute.xlu0 %122
    %126 = vset.pattern.permute.xlu0 0
    %127 = vperm.xlu0 %126, %v53
    %v128 = vpop.permute.xlu0 %127
    %131 = vset.pattern.permute.xlu0 0
    %132 = vperm.xlu0 %131, %v54
    %v133 = vpop.permute.xlu0 %132
    %v135 = vlaneseq
    %v136 = vshrl.u32 %v135, 7
    %v137 = vsub.s32 0, %v136
    %v138 = vrot.slane %v22, %v137
    %v139 = vmul.f32 %v58, %v138
    %v140 = vmul.f32 %v63, %v138
    %v141 = vmul.f32 %v68, %v138
    %v142 = vmul.f32 %v73, %v138
    %v143 = vmul.f32 %v78, %v138
    %v144 = vmul.f32 %v83, %v138
    %v145 = vmul.f32 %v88, %v138
    %v146 = vmul.f32 %v93, %v138
    %v147 = vmul.f32 %v98, %v138
    %v148 = vmul.f32 %v103, %v138
    %v149 = vmul.f32 %v108, %v138
    %v150 = vmul.f32 %v113, %v138
    %v151 = vmul.f32 %v118, %v138
    %v152 = vmul.f32 %v123, %v138
    %v153 = vmul.f32 %v128, %v138
    %v154 = vmul.f32 %v133, %v138
    %155 = vset.pattern.permute.xlu0 1
    %156 = vperm.xlu0 %155, %v39
    %v157 = vpop.permute.xlu0 %156
    %159 = vset.pattern.permute.xlu0 1
    %160 = vperm.xlu0 %159, %v40
    %v161 = vpop.permute.xlu0 %160
    %163 = vset.pattern.permute.xlu0 1
    %164 = vperm.xlu0 %163, %v41
    %v165 = vpop.permute.xlu0 %164
    %167 = vset.pattern.permute.xlu0 1
    %168 = vperm.xlu0 %167, %v42
    %v169 = vpop.permute.xlu0 %168
    %171 = vset.pattern.permute.xlu0 1
    %172 = vperm.xlu0 %171, %v43
    %v173 = vpop.permute.xlu0 %172
    %175 = vset.pattern.permute.xlu0 1
    %176 = vperm.xlu0 %175, %v44
    %v177 = vpop.permute.xlu0 %176
    %179 = vset.pattern.permute.xlu0 1
    %180 = vperm.xlu0 %179, %v45
    %v181 = vpop.permute.xlu0 %180
    %183 = vset.pattern.permute.xlu0 1
    %184 = vperm.xlu0 %183, %v46
    %v185 = vpop.permute.xlu0 %184
    %187 = vset.pattern.permute.xlu0 1
    %188 = vperm.xlu0 %187, %v47
    %v189 = vpop.permute.xlu0 %188
    %191 = vset.pattern.permute.xlu0 1
    %192 = vperm.xlu0 %191, %v48
    %v193 = vpop.permute.xlu0 %192
    %195 = vset.pattern.permute.xlu0 1
    %196 = vperm.xlu0 %195, %v49
    %v197 = vpop.permute.xlu0 %196
    %199 = vset.pattern.permute.xlu0 1
    %200 = vperm.xlu0 %199, %v50
    %v201 = vpop.permute.xlu0 %200
    %203 = vset.pattern.permute.xlu0 1
    %204 = vperm.xlu0 %203, %v51
    %v205 = vpop.permute.xlu0 %204
    %207 = vset.pattern.permute.xlu0 1
    %208 = vperm.xlu0 %207, %v52
    %v209 = vpop.permute.xlu0 %208
    %211 = vset.pattern.permute.xlu0 1
    %212 = vperm.xlu0 %211, %v53
    %v213 = vpop.permute.xlu0 %212
    %215 = vset.pattern.permute.xlu0 1
    %216 = vperm.xlu0 %215, %v54
    %v217 = vpop.permute.xlu0 %216
    %v219 = vlaneseq
    %v220 = vshrl.u32 %v219, 7
    %v221 = vsub.s32 1, %v220
    %v222 = vrot.slane %v22, %v221
    %v223 = vmul.f32 %v157, %v222
    %v224 = vmul.f32 %v161, %v222
    %v225 = vmul.f32 %v165, %v222
    %v226 = vmul.f32 %v169, %v222
    %v227 = vmul.f32 %v173, %v222
    %v228 = vmul.f32 %v177, %v222
    %v229 = vmul.f32 %v181, %v222
    %v230 = vmul.f32 %v185, %v222
    %v231 = vmul.f32 %v189, %v222
    %v232 = vmul.f32 %v193, %v222
    %v233 = vmul.f32 %v197, %v222
    %v234 = vmul.f32 %v201, %v222
    %v235 = vmul.f32 %v205, %v222
    %v236 = vmul.f32 %v209, %v222
    %v237 = vmul.f32 %v213, %v222
    %v238 = vmul.f32 %v217, %v222
    %v239 = vadd.f32 %v139, %v223
    %v240 = vadd.f32 %v140, %v224
    %v241 = vadd.f32 %v141, %v225
    %v242 = vadd.f32 %v142, %v226
    %v243 = vadd.f32 %v143, %v227
    %v244 = vadd.f32 %v144, %v228
    %v245 = vadd.f32 %v145, %v229
    %v246 = vadd.f32 %v146, %v230
    %v247 = vadd.f32 %v147, %v231
    %v248 = vadd.f32 %v148, %v232
    %v249 = vadd.f32 %v149, %v233
    %v250 = vadd.f32 %v150, %v234
    %v251 = vadd.f32 %v151, %v235
    %v252 = vadd.f32 %v152, %v236
    %v253 = vadd.f32 %v153, %v237
    %v254 = vadd.f32 %v154, %v238
    %256 = vset.pattern.permute.xlu0 0
    %257 = vperm.xlu0 %256, %v23
    %v258 = vpop.permute.xlu0 %257
    %261 = vset.pattern.permute.xlu0 0
    %262 = vperm.xlu0 %261, %v24
    %v263 = vpop.permute.xlu0 %262
    %266 = vset.pattern.permute.xlu0 0
    %267 = vperm.xlu0 %266, %v25
    %v268 = vpop.permute.xlu0 %267
    %271 = vset.pattern.permute.xlu0 0
    %272 = vperm.xlu0 %271, %v26
    %v273 = vpop.permute.xlu0 %272
    %276 = vset.pattern.permute.xlu0 0
    %277 = vperm.xlu0 %276, %v27
    %v278 = vpop.permute.xlu0 %277
    %281 = vset.pattern.permute.xlu0 0
    %282 = vperm.xlu0 %281, %v28
    %v283 = vpop.permute.xlu0 %282
    %286 = vset.pattern.permute.xlu0 0
    %287 = vperm.xlu0 %286, %v29
    %v288 = vpop.permute.xlu0 %287
    %291 = vset.pattern.permute.xlu0 0
    %292 = vperm.xlu0 %291, %v30
    %v293 = vpop.permute.xlu0 %292
    %296 = vset.pattern.permute.xlu0 0
    %297 = vperm.xlu0 %296, %v31
    %v298 = vpop.permute.xlu0 %297
    %301 = vset.pattern.permute.xlu0 0
    %302 = vperm.xlu0 %301, %v32
    %v303 = vpop.permute.xlu0 %302
    %306 = vset.pattern.permute.xlu0 0
    %307 = vperm.xlu0 %306, %v33
    %v308 = vpop.permute.xlu0 %307
    %311 = vset.pattern.permute.xlu0 0
    %312 = vperm.xlu0 %311, %v34
    %v313 = vpop.permute.xlu0 %312
    %316 = vset.pattern.permute.xlu0 0
    %317 = vperm.xlu0 %316, %v35
    %v318 = vpop.permute.xlu0 %317
    %321 = vset.pattern.permute.xlu0 0
    %322 = vperm.xlu0 %321, %v36
    %v323 = vpop.permute.xlu0 %322
    %326 = vset.pattern.permute.xlu0 0
    %327 = vperm.xlu0 %326, %v37
    %v328 = vpop.permute.xlu0 %327
    %331 = vset.pattern.permute.xlu0 0
    %332 = vperm.xlu0 %331, %v38
    %v333 = vpop.permute.xlu0 %332
    %v335 = vadd.f32 %v239, %v258
    %v336 = vadd.f32 %v240, %v263
    %v337 = vadd.f32 %v241, %v268
    %v338 = vadd.f32 %v242, %v273
    %v339 = vadd.f32 %v243, %v278
    %v340 = vadd.f32 %v244, %v283
    %v341 = vadd.f32 %v245, %v288
    %v342 = vadd.f32 %v246, %v293
    %v343 = vadd.f32 %v247, %v298
    %v344 = vadd.f32 %v248, %v303
    %v345 = vadd.f32 %v249, %v308
    %v346 = vadd.f32 %v250, %v313
    %v347 = vadd.f32 %v251, %v318
    %v348 = vadd.f32 %v252, %v323
    %v349 = vadd.f32 %v253, %v328
    %v350 = vadd.f32 %v254, %v333
    %v351 = vmax.f32 %v335, 0.0
    %v352 = vmax.f32 %v336, 0.0
    %v353 = vmax.f32 %v337, 0.0
    %v354 = vmax.f32 %v338, 0.0
    %v355 = vmax.f32 %v339, 0.0
    %v356 = vmax.f32 %v340, 0.0
    %v357 = vmax.f32 %v341, 0.0
    %v358 = vmax.f32 %v342, 0.0
    %v359 = vmax.f32 %v343, 0.0
    %v360 = vmax.f32 %v344, 0.0
    %v361 = vmax.f32 %v345, 0.0
    %v362 = vmax.f32 %v346, 0.0
    %v363 = vmax.f32 %v347, 0.0
    %v364 = vmax.f32 %v348, 0.0
    %v365 = vmax.f32 %v349, 0.0
    %v366 = vmax.f32 %v350, 0.0
    %v367 = vld [vmem:[%s2] sm:$0xf]
    %v368 = vld [vmem:[%s2 + $0x4] sm:$0xf]
    %v369 = vld [vmem:[%s2 + $0x8] sm:$0xf]
    %v370 = vld [vmem:[%s2 + $0xc] sm:$0xf]
    %v371 = vld [vmem:[%s2 + $0x10] sm:$0xf]
    %v372 = vld [vmem:[%s2 + $0x14] sm:$0xf]
    %v373 = vld [vmem:[%s2 + $0x18] sm:$0xf]
    %v374 = vld [vmem:[%s2 + $0x1c] sm:$0xf]
    %v375 = vld [vmem:[%s2 + $0x20] sm:$0xf]
    %v376 = vld [vmem:[%s2 + $0x24] sm:$0xf]
    %v377 = vld [vmem:[%s2 + $0x28] sm:$0xf]
    %v378 = vld [vmem:[%s2 + $0x2c] sm:$0xf]
    %v379 = vld [vmem:[%s2 + $0x30] sm:$0xf]
    %v380 = vld [vmem:[%s2 + $0x34] sm:$0xf]
    %v381 = vld [vmem:[%s2 + $0x38] sm:$0xf]
    %v382 = vld [vmem:[%s2 + $0x3c] sm:$0xf]
    %v383 = vpack.c.bf16 %v352, %v351
    %v384 = vpack.c.bf16 %v354, %v353
    %v385 = vpack.c.bf16 %v356, %v355
    %v386 = vpack.c.bf16 %v358, %v357
    %v387 = vpack.c.bf16 %v360, %v359
    %v388 = vpack.c.bf16 %v362, %v361
    %v389 = vpack.c.bf16 %v364, %v363
    %v390 = vpack.c.bf16 %v366, %v365
    %391 = vset.pattern.permute.xlu0 1
    %392 = vperm.xlu0 %391, %v23
    %v393 = vpop.permute.xlu0 %392
    %395 = vset.pattern.permute.xlu0 1
    %396 = vperm.xlu0 %395, %v24
    %v397 = vpop.permute.xlu0 %396
    %399 = vset.pattern.permute.xlu0 1
    %400 = vperm.xlu0 %399, %v25
    %v401 = vpop.permute.xlu0 %400
    %403 = vset.pattern.permute.xlu0 1
    %404 = vperm.xlu0 %403, %v26
    %v405 = vpop.permute.xlu0 %404
    %407 = vset.pattern.permute.xlu0 1
    %408 = vperm.xlu0 %407, %v27
    %v409 = vpop.permute.xlu0 %408
    %411 = vset.pattern.permute.xlu0 1
    %412 = vperm.xlu0 %411, %v28
    %v413 = vpop.permute.xlu0 %412
    %415 = vset.pattern.permute.xlu0 1
    %416 = vperm.xlu0 %415, %v29
    %v417 = vpop.permute.xlu0 %416
    %419 = vset.pattern.permute.xlu0 1
    %420 = vperm.xlu0 %419, %v30
    %v421 = vpop.permute.xlu0 %420
    %423 = vset.pattern.permute.xlu0 1
    %424 = vperm.xlu0 %423, %v31
    %v425 = vpop.permute.xlu0 %424
    %427 = vset.pattern.permute.xlu0 1
    %428 = vperm.xlu0 %427, %v32
    %v429 = vpop.permute.xlu0 %428
    %431 = vset.pattern.permute.xlu0 1
    %432 = vperm.xlu0 %431, %v33
    %v433 = vpop.permute.xlu0 %432
    %435 = vset.pattern.permute.xlu0 1
    %436 = vperm.xlu0 %435, %v34
    %v437 = vpop.permute.xlu0 %436
    %439 = vset.pattern.permute.xlu0 1
    %440 = vperm.xlu0 %439, %v35
    %v441 = vpop.permute.xlu0 %440
    %443 = vset.pattern.permute.xlu0 1
    %444 = vperm.xlu0 %443, %v36
    %v445 = vpop.permute.xlu0 %444
    %447 = vset.pattern.permute.xlu0 1
    %448 = vperm.xlu0 %447, %v37
    %v449 = vpop.permute.xlu0 %448
    %451 = vset.pattern.permute.xlu0 1
    %452 = vperm.xlu0 %451, %v38
    %v453 = vpop.permute.xlu0 %452
    %v471 = vunpack.c.l.b16 %v367
    %v472 = vunpack.c.l.b16 %v368
    %v473 = vunpack.c.l.b16 %v369
    %v474 = vunpack.c.l.b16 %v370
    %v475 = vunpack.c.l.b16 %v371
    %v476 = vunpack.c.l.b16 %v372
    %v477 = vunpack.c.l.b16 %v373
    %v478 = vunpack.c.l.b16 %v374
    %v479 = vunpack.c.l.b16 %v375
    %v480 = vunpack.c.l.b16 %v376
    %v481 = vunpack.c.l.b16 %v377
    %v482 = vunpack.c.l.b16 %v378
    %v483 = vunpack.c.l.b16 %v379
    %v484 = vunpack.c.l.b16 %v380
    %v485 = vunpack.c.l.b16 %v381
    %v486 = vunpack.c.l.b16 %v382
    %v487 = vpack.c.b16 %v472, %v471
    %v488 = vpack.c.b16 %v474, %v473
    %v489 = vpack.c.b16 %v476, %v475
    %v490 = vpack.c.b16 %v478, %v477
    %v491 = vpack.c.b16 %v480, %v479
    %v492 = vpack.c.b16 %v482, %v481
    %v493 = vpack.c.b16 %v484, %v483
    %v494 = vpack.c.b16 %v486, %v485
    %503 = vmatprep.subr.bf16.mxu0 0
    %504 = vmatpush1.bf16.msra.mxu0 %v390
    %505 = vmatprep.subr.bf16.mxu0 0
    %506 = vmatpush1.bf16.msra.mxu0 %v389
    %507 = vmatprep.subr.bf16.mxu0 0
    %508 = vmatpush1.bf16.msra.mxu0 %v388
    %509 = vmatprep.subr.bf16.mxu0 0
    %510 = vmatpush1.bf16.msra.mxu0 %v387
    %511 = vmatprep.subr.bf16.mxu0 0
    %512 = vmatpush1.bf16.msra.mxu0 %v386
    %513 = vmatprep.subr.bf16.mxu0 0
    %514 = vmatpush1.bf16.msra.mxu0 %v385
    %515 = vmatprep.subr.bf16.mxu0 0
    %516 = vmatpush1.bf16.msra.mxu0 %v384
    %517 = vmatprep.subr.bf16.mxu0 0
    %518 = vmatpush1.bf16.msra.mxu0 %v383
    %519 = vmatprep.subr.bf16.mxu0 0
    %520 = vmatpush2.bf16.msra.mxu0 0
    %521 = vmatprep.subr.bf16.mxu0 0
    %522 = vmatpush2.bf16.msra.mxu0 0
    %523 = vmatprep.subr.bf16.mxu0 0
    %524 = vmatpush2.bf16.msra.mxu0 0
    %525 = vmatprep.subr.bf16.mxu0 0
    %526 = vmatpush2.bf16.msra.mxu0 0
    %527 = vmatprep.subr.bf16.mxu0 0
    %528 = vmatpush2.bf16.msra.mxu0 0
    %529 = vmatprep.subr.bf16.mxu0 0
    %530 = vmatpush2.bf16.msra.mxu0 0
    %531 = vmatprep.subr.bf16.mxu0 0
    %532 = vmatpush2.bf16.msra.mxu0 0
    %533 = vmatprep.subr.bf16.mxu0 0
    %534 = vmatpush2.bf16.msra.mxu0 0
    %535 = vmatprep.mubr.bf16.mxu0 0
    %536 = vmatmul.mubr.bf16.gmra.mxu0 %v487
    %v537 = vpop.f32.mrf.mxu0
    %v538 = vadd.f32 %v393, %v537
    %v539 = vpop.f32.mrf.mxu0
    %v540 = vpop.f32.mrf.mxu0
    %v541 = vadd.f32 %v397, %v540
    %v542 = vpop.f32.mrf.mxu0
    %543 = vmatprep.mubr.bf16.mxu0 0
    %544 = vmatmul.mubr.bf16.gmra.mxu0 %v488
    %v545 = vpop.f32.mrf.mxu0
    %v546 = vadd.f32 %v401, %v545
    %v547 = vpop.f32.mrf.mxu0
    %v548 = vpop.f32.mrf.mxu0
    %v549 = vadd.f32 %v405, %v548
    %v550 = vpop.f32.mrf.mxu0
    %551 = vmatprep.mubr.bf16.mxu0 0
    %552 = vmatmul.mubr.bf16.gmra.mxu0 %v489
    %v553 = vpop.f32.mrf.mxu0
    %v554 = vadd.f32 %v409, %v553
    %v555 = vpop.f32.mrf.mxu0
    %v556 = vpop.f32.mrf.mxu0
    %v557 = vadd.f32 %v413, %v556
    %v558 = vpop.f32.mrf.mxu0
    %559 = vmatprep.mubr.bf16.mxu0 0
    %560 = vmatmul.mubr.bf16.gmra.mxu0 %v490
    %v561 = vpop.f32.mrf.mxu0
    %v562 = vadd.f32 %v417, %v561
    %v563 = vpop.f32.mrf.mxu0
    %v564 = vpop.f32.mrf.mxu0
    %v565 = vadd.f32 %v421, %v564
    %v566 = vpop.f32.mrf.mxu0
    %567 = vmatprep.mubr.bf16.mxu0 0
    %568 = vmatmul.mubr.bf16.gmra.mxu0 %v491
    %v569 = vpop.f32.mrf.mxu0
    %v570 = vadd.f32 %v425, %v569
    %v571 = vpop.f32.mrf.mxu0
    %v572 = vpop.f32.mrf.mxu0
    %v573 = vadd.f32 %v429, %v572
    %v574 = vpop.f32.mrf.mxu0
    %575 = vmatprep.mubr.bf16.mxu0 0
    %576 = vmatmul.mubr.bf16.gmra.mxu0 %v492
    %v577 = vpop.f32.mrf.mxu0
    %v578 = vadd.f32 %v433, %v577
    %v579 = vpop.f32.mrf.mxu0
    %v580 = vpop.f32.mrf.mxu0
    %v581 = vadd.f32 %v437, %v580
    %v582 = vpop.f32.mrf.mxu0
    %583 = vmatprep.mubr.bf16.mxu0 0
    %584 = vmatmul.mubr.bf16.gmra.mxu0 %v493
    %v585 = vpop.f32.mrf.mxu0
    %v586 = vadd.f32 %v441, %v585
    %v587 = vpop.f32.mrf.mxu0
    %v588 = vpop.f32.mrf.mxu0
    %v589 = vadd.f32 %v445, %v588
    %v590 = vpop.f32.mrf.mxu0
    %591 = vmatprep.mubr.bf16.mxu0 0
    %592 = vmatmul.mubr.bf16.gmra.mxu0 %v494
    %v593 = vpop.f32.mrf.mxu0
    %v594 = vadd.f32 %v449, %v593
    %v595 = vpop.f32.mrf.mxu0
    %v596 = vpop.f32.mrf.mxu0
    %v597 = vadd.f32 %v453, %v596
    %v598 = vpop.f32.mrf.mxu0
    %599 = vdwg.mxu0
    %v600 = vmax.f32 %v538, 0.0
    %v601 = vmax.f32 %v541, 0.0
    %v602 = vmax.f32 %v546, 0.0
    %v603 = vmax.f32 %v549, 0.0
    %v604 = vmax.f32 %v554, 0.0
    %v605 = vmax.f32 %v557, 0.0
    %v606 = vmax.f32 %v562, 0.0
    %v607 = vmax.f32 %v565, 0.0
    %v608 = vmax.f32 %v570, 0.0
    %v609 = vmax.f32 %v573, 0.0
    %v610 = vmax.f32 %v578, 0.0
    %v611 = vmax.f32 %v581, 0.0
    %v612 = vmax.f32 %v586, 0.0
    %v613 = vmax.f32 %v589, 0.0
    %v614 = vmax.f32 %v594, 0.0
    %v615 = vmax.f32 %v597, 0.0
    %v616 = vld [vmem:[%s3] sm:$0xf]
    %v617 = vpack.c.bf16 %v601, %v600
    %v618 = vpack.c.bf16 %v603, %v602
    %v619 = vpack.c.bf16 %v605, %v604
    %v620 = vpack.c.bf16 %v607, %v606
    %v621 = vpack.c.bf16 %v609, %v608
    %v622 = vpack.c.bf16 %v611, %v610
    %v623 = vpack.c.bf16 %v613, %v612
    %v624 = vpack.c.bf16 %v615, %v614
    %625 = vset.pattern.permute.xlu0 2
    %626 = vperm.xlu0 %625, %v23
    %v627 = vpop.permute.xlu0 %626
    %629 = vmatprep.subr.bf16.mxu0 0
    %630 = vmatpush1.bf16.msra.mxu0 %v624
    %631 = vmatprep.subr.bf16.mxu0 0
    %632 = vmatpush1.bf16.msra.mxu0 %v623
    %633 = vmatprep.subr.bf16.mxu0 0
    %634 = vmatpush1.bf16.msra.mxu0 %v622
    %635 = vmatprep.subr.bf16.mxu0 0
    %636 = vmatpush1.bf16.msra.mxu0 %v621
    %637 = vmatprep.subr.bf16.mxu0 0
    %638 = vmatpush1.bf16.msra.mxu0 %v620
    %639 = vmatprep.subr.bf16.mxu0 0
    %640 = vmatpush1.bf16.msra.mxu0 %v619
    %641 = vmatprep.subr.bf16.mxu0 0
    %642 = vmatpush1.bf16.msra.mxu0 %v618
    %643 = vmatprep.subr.bf16.mxu0 0
    %644 = vmatpush1.bf16.msra.mxu0 %v617
    %645 = vmatprep.subr.bf16.mxu0 0
    %646 = vmatpush2.bf16.msra.mxu0 0
    %647 = vmatprep.subr.bf16.mxu0 0
    %648 = vmatpush2.bf16.msra.mxu0 0
    %649 = vmatprep.subr.bf16.mxu0 0
    %650 = vmatpush2.bf16.msra.mxu0 0
    %651 = vmatprep.subr.bf16.mxu0 0
    %652 = vmatpush2.bf16.msra.mxu0 0
    %653 = vmatprep.subr.bf16.mxu0 0
    %654 = vmatpush2.bf16.msra.mxu0 0
    %655 = vmatprep.subr.bf16.mxu0 0
    %656 = vmatpush2.bf16.msra.mxu0 0
    %657 = vmatprep.subr.bf16.mxu0 0
    %658 = vmatpush2.bf16.msra.mxu0 0
    %659 = vmatprep.subr.bf16.mxu0 0
    %660 = vmatpush2.bf16.msra.mxu0 0
    %661 = vmatprep.mubr.bf16.mxu0 0
    %662 = vmatmul.mubr.bf16.gmra.mxu0 %v616
    %v663 = vpop.f32.mrf.mxu0
    %v664 = vadd.f32 %v627, %v663
    %v665 = vpop.f32.mrf.mxu0
    %v666 = vpop.f32.mrf.mxu0
    %v667 = vpop.f32.mrf.mxu0
    %668 = vdwg.mxu0
    %v669 = vmax.f32 %v664, 0.0
    %v670 = vmin.f32 %v669, 1.0
    %671 = vst [vmem:[#allocation2] sm:$0xff] %v670
    // Predicated region
    $region22: #{tpu_custom_call.1} parent=1 // pred_check
      _
    $region23: #{tpu_custom_call.1} parent=1 // pred_check_branch
      %673 = sbr.rel (0) target = $region25
    $region24: #{tpu_custom_call.1} parent=1 // pred_region
      %s675 = ssub.s32 128, 128
      %676 = vsyncadd [#allocation3], %s675
      %s678 = sshll.u32 [#allocation2], 4
      %s679 = int_to_ptr.vmem [resolvable:$true] %s678
      %681 = dma.vmem_to_hbm [thread:$0]  %s679, 128, %s5, [#allocation3]
    $region25: #{tpu_custom_call.1} parent=1 // pred_fallthru
      _
    // Predicated region
    $region26: #{tpu_custom_call.1} parent=1 // pred_check
      _
    $region27: #{tpu_custom_call.1} parent=1 // pred_check_branch
      %683 = sbr.rel (0) target = $region29
    $region28: #{tpu_custom_call.1} parent=1 // pred_region
      %684 = dma.done [#allocation3], 128
    $region29: #{tpu_custom_call.1} parent=1 // pred_fallthru
      _
    %685 = vsyncpa [#allocation3], 1

</llo_original>
